<compile_context>
chip_gen: v7x
topology: tpu7x:2x2x1
jax: 0.10.0
libtpu: 0.0.40
codegen_flags: <defaults>
</compile_context>

<pallas_src>
import functools

import jax
import jax.numpy as jnp
from jax.experimental import pallas as pl
from jax.experimental.pallas import tpu as pltpu


def _log_sigmoid(x):
    # Numerically stable log(sigmoid(x)) = min(x, 0) - log1p(exp(-|x|)).
    # exp/log run on the EUP slot, which is otherwise idle in this kernel.
    return jnp.minimum(x, 0.0) - jnp.log1p(jnp.exp(-jnp.abs(x)))


def _skipgram_tile_kernel(u_ref, comb_ref, out_ref, *, batch, tile_b, n_samples):
    """One batch tile: (D, TB) x (S, D, TB) -> (1, 1, TB) partial loss."""
    i = pl.program_id(0)

    u = u_ref[...]                                     # (D, TB) bf16 center words

    # Stream the reduction one sample at a time (S is small and static): the
    # peak live f32 intermediate is a single (D, TB) slab instead of the full
    # (S, D, TB) product, so nothing spills even at large TB.
    acc = jnp.zeros((1, tile_b), jnp.float32)
    for s in range(n_samples):
        # bf16 multiply (VPU has slack; v5e legalizes it via f32), f32 reduce.
        prod = (comb_ref[s] * u).astype(jnp.float32)   # (D, TB)
        score = jnp.sum(prod, axis=0, keepdims=True)   # (1, TB), lane-dense
        # Sample 0 is the positive pair (+score); samples 1.. are negatives.
        signed = score if s == 0 else -score
        acc = acc + _log_sigmoid(signed)

    # Mask padded batch columns so they do not contribute logsigmoid(0).
    col = i * tile_b + jax.lax.broadcasted_iota(jnp.int32, (1, tile_b), 1)
    acc = jnp.where(col < batch, acc, 0.0)

    out_ref[...] = acc[None]                           # (1, 1, TB)


def _vmem_limit_bytes():
    """Generation-aware VMEM request: ~3/4 of physical, capped at 96 MiB."""
    try:
        cap = int(pltpu.get_tpu_info().vmem_capacity_bytes)
    except Exception:
        cap = 64 * 1024 * 1024          # conservative fallback (v7x per-TC size)
    return int(min((cap * 3) // 4, 96 * 1024 * 1024))


def _choose_tiling(batch, dim, n_samples, vmem_limit):
    """Pick (tile_b, num_tiles, b_pad): lane-dense batch tiles, mult. of 128."""
    b_rounded = ((batch + 127) // 128) * 128

    # Resident bytes per batch column: double-buffered bf16 input blocks,
    # streamed f32 intermediates (~3 (D,) slabs), double-buffered f32 output.
    bytes_per_col = 2 * 2 * dim * (1 + n_samples) + 3 * 4 * dim + 2 * 4
    vmem_cols = max(128, (vmem_limit // 2) // bytes_per_col)

    # Target ~4 MiB of input bytes per grid step (amortize ~0.35 us step cost).
    target_cols = max(128, (4 * 1024 * 1024) // (2 * dim * (1 + n_samples)))

    tile_b = min(vmem_cols, target_cols, b_rounded)
    tile_b = max(128, (tile_b // 128) * 128)

    num_tiles = -(-b_rounded // tile_b)                # cdiv
    # dimension_semantics=("parallel",) only feeds both v7x TensorCores if the
    # grid has >= 2 tiles; the extra step costs ~0.35 us elsewhere, so always
    # split when the batch allows it.
    if num_tiles == 1 and b_rounded >= 256:
        num_tiles = 2
    # Balanced tiles bound pad waste to < 128 columns per tile.
    tile_b = ((-(-b_rounded // num_tiles) + 127) // 128) * 128
    b_pad = num_tiles * tile_b
    return int(tile_b), int(num_tiles), int(b_pad)


def skipgram_forward(u_weight, v_weight, pos_u, pos_v, neg_v):
    """Negative-sampling skip-gram loss. Gathers are JAX glue; loss math is Pallas."""
    batch = pos_u.shape[0]
    num_neg = neg_v.shape[1]
    dim = u_weight.shape[1]
    n_samples = num_neg + 1                                    # pos fused as sample 0

    # --- bf16 BEFORE the gather: the tables are small, and every downstream
    # HBM pass (gather write, transpose read+write, pad, kernel read) now
    # moves half the bytes. ---------------------------------------------------
    u_w16 = u_weight.astype(jnp.bfloat16)
    v_w16 = v_weight.astype(jnp.bfloat16)

    # --- embedding gathers (glue) --------------------------------------------
    emb_u = jnp.take(u_w16, pos_u, axis=0)                     # (B, D) bf16
    v_idx = jnp.concatenate([pos_v[:, None], neg_v], axis=1)   # (B, S)
    comb = jnp.take(v_w16, v_idx, axis=0)                      # (B, S, D) bf16

    # --- lane-dense transposed layout ----------------------------------------
    vmem_limit = _vmem_limit_bytes()
    tile_b, num_tiles, b_pad = _choose_tiling(batch, dim, n_samples, vmem_limit)

    u_t = jnp.pad(emb_u.T, ((0, 0), (0, b_pad - batch)))                   # (D, Bp)
    comb_t = jnp.pad(jnp.transpose(comb, (1, 2, 0)),
                     ((0, 0), (0, 0), (0, b_pad - batch)))                 # (S, D, Bp)

    kernel = functools.partial(
        _skipgram_tile_kernel, batch=batch, tile_b=tile_b, n_samples=n_samples)

    cost = pl.CostEstimate(
        flops=2 * batch * n_samples * dim,
        transcendentals=2 * batch * n_samples,
        bytes_accessed=2 * b_pad * dim * (1 + n_samples) + 4 * num_tiles * tile_b,
    )

    partials = pl.pallas_call(
        kernel,
        out_shape=jax.ShapeDtypeStruct((num_tiles, 1, tile_b), jnp.float32),
        grid_spec=pltpu.PrefetchScalarGridSpec(
            num_scalar_prefetch=0,
            grid=(num_tiles,),
            in_specs=[
                pl.BlockSpec((dim, tile_b), lambda i: (0, i)),
                pl.BlockSpec((n_samples, dim, tile_b), lambda i: (0, 0, i)),
            ],
            out_specs=pl.BlockSpec((1, 1, tile_b), lambda i: (i, 0, 0)),
        ),
        compiler_params=pltpu.CompilerParams(
            dimension_semantics=("parallel",),
            vmem_limit_bytes=vmem_limit,
        ),
        cost_estimate=cost,
    )(u_t, comb_t)

    return -jnp.sum(partials)


def reference_forward(u_weight, v_weight, pos_u, pos_v, neg_v):
    emb_u = u_weight[pos_u]
    emb_v = v_weight[pos_v]
    score = jax.nn.log_sigmoid(jnp.sum(emb_u * emb_v, axis=1))
    neg_emb_v = v_weight[neg_v]
    neg_score = jax.nn.log_sigmoid(-jnp.einsum("bnd,bd->bn", neg_emb_v, emb_u))
    return -(jnp.sum(score) + jnp.sum(neg_score))


def _make_inputs(key, vocab_size, emb_dim, batch, num_neg):
    ku, kv, k1, k2, k3 = jax.random.split(key, 5)
    init_range = 0.5 / emb_dim
    u_weight = jax.random.uniform(
        ku, (vocab_size, emb_dim), jnp.float32, -init_range, init_range)
    # NOTE: the PyTorch module zero-inits v_embeddings; use a small uniform
    # init so the kernel exercises nontrivial math.
    v_weight = jax.random.uniform(
        kv, (vocab_size, emb_dim), jnp.float32, -init_range, init_range)
    pos_u = jax.random.randint(k1, (batch,), 0, vocab_size, dtype=jnp.int32)
    pos_v = jax.random.randint(k2, (batch,), 0, vocab_size, dtype=jnp.int32)
    neg_v = jax.random.randint(k3, (batch, num_neg), 0, vocab_size, dtype=jnp.int32)
    return u_weight, v_weight, pos_u, pos_v, neg_v


if __name__ == "__main__":
    key = jax.random.PRNGKey(0)
    key_a, key_b = jax.random.split(key)

    fwd = jax.jit(skipgram_forward)

    # Small single-tile case (shapes consistent with the module's forward).
    args = _make_inputs(key_a, vocab_size=50, emb_dim=32, batch=8, num_neg=4)
    loss = jax.block_until_ready(fwd(*args))
    ref = reference_forward(*args)
    # bf16 transport of the gathered embeddings keeps the error well inside this.
    assert jnp.allclose(loss, ref, rtol=1e-2, atol=1e-2), (loss, ref)

    # Multi-tile case: exercises the >=2-tile split (v7x 2-TC path), balanced
    # tiling, and the padded-column mask (batch not a multiple of the tile).
    args2 = _make_inputs(key_b, vocab_size=96, emb_dim=64, batch=300, num_neg=5)
    loss2 = jax.block_until_ready(fwd(*args2))
    ref2 = reference_forward(*args2)
    assert jnp.allclose(loss2, ref2, rtol=1e-2, atol=1e-2), (loss2, ref2)

    print("KERNEL_OK")
</pallas_src>

<mosaic_0001>
module attributes {stable_mosaic.version = 11 : i64} {
  func.func @_skipgram_tile_kernel(%arg0: i32, %arg1: memref<32x128xbf16, #tpu.memory_space<vmem>>, %arg2: memref<5x32x128xbf16, #tpu.memory_space<vmem>>, %arg3: memref<1x1x128xf32, #tpu.memory_space<vmem>>) attributes {dimension_semantics = [#tpu.dimension_semantics<parallel>], iteration_bounds = array<i64: 1>, scalar_prefetch = 0 : i64, scratch_operands = 0 : i64, tpu.core_type = #tpu.core_type<tc>, window_params = [{transform_indices = @transform_0, window_bounds = array<i64: 32, 128>}, {transform_indices = @transform_1, window_bounds = array<i64: 5, 32, 128>}, {transform_indices = @transform_2, window_bounds = array<i64: 1, 1, 128>}]} {
    %c0 = arith.constant 0 : index
    %c0_0 = arith.constant 0 : index
    %0 = vector.load %arg1[%c0, %c0_0] : memref<32x128xbf16, #tpu.memory_space<vmem>>, vector<32x128xbf16>
    %cst = arith.constant 0.000000e+00 : f32
    %1 = vector.broadcast %cst : f32 to vector<1x128xf32>
    %c0_1 = arith.constant 0 : index
    %c0_2 = arith.constant 0 : index
    %c0_3 = arith.constant 0 : index
    %2 = vector.load %arg2[%c0_1, %c0_2, %c0_3] : memref<5x32x128xbf16, #tpu.memory_space<vmem>>, vector<1x32x128xbf16>
    %3 = vector.shape_cast %2 : vector<1x32x128xbf16> to vector<32x128xbf16>
    %4 = arith.mulf %3, %0 : vector<32x128xbf16>
    %5 = arith.extf %4 : vector<32x128xbf16> to vector<32x128xf32>
    %cst_4 = arith.constant dense<0.000000e+00> : vector<128xf32>
    %6 = vector.multi_reduction <add>, %5, %cst_4 [0] : vector<32x128xf32> to vector<128xf32>
    %7 = vector.shape_cast %6 : vector<128xf32> to vector<1x128xf32>
    %cst_5 = arith.constant 0.000000e+00 : f32
    %8 = vector.broadcast %cst_5 : f32 to vector<1x128xf32>
    %9 = arith.minimumf %7, %8 : vector<1x128xf32>
    %10 = math.absf %7 : vector<1x128xf32>
    %cst_6 = arith.constant 0.000000e+00 : f32
    %11 = vector.broadcast %cst_6 : f32 to vector<1x128xf32>
    %12 = arith.subf %11, %10 : vector<1x128xf32>
    %13 = math.exp %12 : vector<1x128xf32>
    %14 = math.log1p %13 : vector<1x128xf32>
    %15 = arith.subf %9, %14 : vector<1x128xf32>
    %16 = arith.addf %1, %15 : vector<1x128xf32>
    %c1 = arith.constant 1 : index
    %c0_7 = arith.constant 0 : index
    %c0_8 = arith.constant 0 : index
    %17 = vector.load %arg2[%c1, %c0_7, %c0_8] : memref<5x32x128xbf16, #tpu.memory_space<vmem>>, vector<1x32x128xbf16>
    %18 = vector.shape_cast %17 : vector<1x32x128xbf16> to vector<32x128xbf16>
    %19 = arith.mulf %18, %0 : vector<32x128xbf16>
    %20 = arith.extf %19 : vector<32x128xbf16> to vector<32x128xf32>
    %cst_9 = arith.constant dense<0.000000e+00> : vector<128xf32>
    %21 = vector.multi_reduction <add>, %20, %cst_9 [0] : vector<32x128xf32> to vector<128xf32>
    %22 = vector.shape_cast %21 : vector<128xf32> to vector<1x128xf32>
    %cst_10 = arith.constant 0.000000e+00 : f32
    %23 = vector.broadcast %cst_10 : f32 to vector<1x128xf32>
    %24 = arith.subf %23, %22 : vector<1x128xf32>
    %cst_11 = arith.constant 0.000000e+00 : f32
    %25 = vector.broadcast %cst_11 : f32 to vector<1x128xf32>
    %26 = arith.minimumf %24, %25 : vector<1x128xf32>
    %27 = math.absf %24 : vector<1x128xf32>
    %cst_12 = arith.constant 0.000000e+00 : f32
    %28 = vector.broadcast %cst_12 : f32 to vector<1x128xf32>
    %29 = arith.subf %28, %27 : vector<1x128xf32>
    %30 = math.exp %29 : vector<1x128xf32>
    %31 = math.log1p %30 : vector<1x128xf32>
    %32 = arith.subf %26, %31 : vector<1x128xf32>
    %33 = arith.addf %16, %32 : vector<1x128xf32>
    %c2 = arith.constant 2 : index
    %c0_13 = arith.constant 0 : index
    %c0_14 = arith.constant 0 : index
    %34 = vector.load %arg2[%c2, %c0_13, %c0_14] : memref<5x32x128xbf16, #tpu.memory_space<vmem>>, vector<1x32x128xbf16>
    %35 = vector.shape_cast %34 : vector<1x32x128xbf16> to vector<32x128xbf16>
    %36 = arith.mulf %35, %0 : vector<32x128xbf16>
    %37 = arith.extf %36 : vector<32x128xbf16> to vector<32x128xf32>
    %cst_15 = arith.constant dense<0.000000e+00> : vector<128xf32>
    %38 = vector.multi_reduction <add>, %37, %cst_15 [0] : vector<32x128xf32> to vector<128xf32>
    %39 = vector.shape_cast %38 : vector<128xf32> to vector<1x128xf32>
    %cst_16 = arith.constant 0.000000e+00 : f32
    %40 = vector.broadcast %cst_16 : f32 to vector<1x128xf32>
    %41 = arith.subf %40, %39 : vector<1x128xf32>
    %cst_17 = arith.constant 0.000000e+00 : f32
    %42 = vector.broadcast %cst_17 : f32 to vector<1x128xf32>
    %43 = arith.minimumf %41, %42 : vector<1x128xf32>
    %44 = math.absf %41 : vector<1x128xf32>
    %cst_18 = arith.constant 0.000000e+00 : f32
    %45 = vector.broadcast %cst_18 : f32 to vector<1x128xf32>
    %46 = arith.subf %45, %44 : vector<1x128xf32>
    %47 = math.exp %46 : vector<1x128xf32>
    %48 = math.log1p %47 : vector<1x128xf32>
    %49 = arith.subf %43, %48 : vector<1x128xf32>
    %50 = arith.addf %33, %49 : vector<1x128xf32>
    %c3 = arith.constant 3 : index
    %c0_19 = arith.constant 0 : index
    %c0_20 = arith.constant 0 : index
    %51 = vector.load %arg2[%c3, %c0_19, %c0_20] : memref<5x32x128xbf16, #tpu.memory_space<vmem>>, vector<1x32x128xbf16>
    %52 = vector.shape_cast %51 : vector<1x32x128xbf16> to vector<32x128xbf16>
    %53 = arith.mulf %52, %0 : vector<32x128xbf16>
    %54 = arith.extf %53 : vector<32x128xbf16> to vector<32x128xf32>
    %cst_21 = arith.constant dense<0.000000e+00> : vector<128xf32>
    %55 = vector.multi_reduction <add>, %54, %cst_21 [0] : vector<32x128xf32> to vector<128xf32>
    %56 = vector.shape_cast %55 : vector<128xf32> to vector<1x128xf32>
    %cst_22 = arith.constant 0.000000e+00 : f32
    %57 = vector.broadcast %cst_22 : f32 to vector<1x128xf32>
    %58 = arith.subf %57, %56 : vector<1x128xf32>
    %cst_23 = arith.constant 0.000000e+00 : f32
    %59 = vector.broadcast %cst_23 : f32 to vector<1x128xf32>
    %60 = arith.minimumf %58, %59 : vector<1x128xf32>
    %61 = math.absf %58 : vector<1x128xf32>
    %cst_24 = arith.constant 0.000000e+00 : f32
    %62 = vector.broadcast %cst_24 : f32 to vector<1x128xf32>
    %63 = arith.subf %62, %61 : vector<1x128xf32>
    %64 = math.exp %63 : vector<1x128xf32>
    %65 = math.log1p %64 : vector<1x128xf32>
    %66 = arith.subf %60, %65 : vector<1x128xf32>
    %67 = arith.addf %50, %66 : vector<1x128xf32>
    %c4 = arith.constant 4 : index
    %c0_25 = arith.constant 0 : index
    %c0_26 = arith.constant 0 : index
    %68 = vector.load %arg2[%c4, %c0_25, %c0_26] : memref<5x32x128xbf16, #tpu.memory_space<vmem>>, vector<1x32x128xbf16>
    %69 = vector.shape_cast %68 : vector<1x32x128xbf16> to vector<32x128xbf16>
    %70 = arith.mulf %69, %0 : vector<32x128xbf16>
    %71 = arith.extf %70 : vector<32x128xbf16> to vector<32x128xf32>
    %cst_27 = arith.constant dense<0.000000e+00> : vector<128xf32>
    %72 = vector.multi_reduction <add>, %71, %cst_27 [0] : vector<32x128xf32> to vector<128xf32>
    %73 = vector.shape_cast %72 : vector<128xf32> to vector<1x128xf32>
    %cst_28 = arith.constant 0.000000e+00 : f32
    %74 = vector.broadcast %cst_28 : f32 to vector<1x128xf32>
    %75 = arith.subf %74, %73 : vector<1x128xf32>
    %cst_29 = arith.constant 0.000000e+00 : f32
    %76 = vector.broadcast %cst_29 : f32 to vector<1x128xf32>
    %77 = arith.minimumf %75, %76 : vector<1x128xf32>
    %78 = math.absf %75 : vector<1x128xf32>
    %cst_30 = arith.constant 0.000000e+00 : f32
    %79 = vector.broadcast %cst_30 : f32 to vector<1x128xf32>
    %80 = arith.subf %79, %78 : vector<1x128xf32>
    %81 = math.exp %80 : vector<1x128xf32>
    %82 = math.log1p %81 : vector<1x128xf32>
    %83 = arith.subf %77, %82 : vector<1x128xf32>
    %84 = arith.addf %67, %83 : vector<1x128xf32>
    %c128_i32 = arith.constant 128 : i32
    %85 = arith.muli %arg0, %c128_i32 : i32
    %86 = tpu.iota {dimensions = array<i32: 1>} : vector<1x128xi32>
    %87 = vector.broadcast %85 : i32 to vector<1x128xi32>
    %88 = arith.addi %87, %86 : vector<1x128xi32>
    %c8_i32 = arith.constant 8 : i32
    %89 = vector.broadcast %c8_i32 : i32 to vector<1x128xi32>
    %90 = arith.cmpi slt, %88, %89 : vector<1x128xi32>
    %cst_31 = arith.constant 0.000000e+00 : f32
    %91 = vector.broadcast %cst_31 : f32 to vector<1x128xf32>
    %92 = arith.select %90, %84, %91 : vector<1x128xi1>, vector<1x128xf32>
    %93 = vector.shape_cast %92 : vector<1x128xf32> to vector<1x1x128xf32>
    %c0_32 = arith.constant 0 : index
    %c0_33 = arith.constant 0 : index
    %c0_34 = arith.constant 0 : index
    %94 = vector.load %arg3[%c0_32, %c0_33, %c0_34] : memref<1x1x128xf32, #tpu.memory_space<vmem>>, vector<1x1x128xf32>
    tpu.vector_store %arg3[%c0_32, %c0_33, %c0_34], %93 {strides = array<i32>} : memref<1x1x128xf32, #tpu.memory_space<vmem>>, vector<1x1x128xf32>,
    return
  }
  func.func @transform_0(%arg0: i32) -> (i32, i32) {
    %c0_i32 = arith.constant 0 : i32
    %c0_i32_0 = arith.constant 0 : i32
    return %c0_i32, %arg0 : i32, i32
  }
  func.func @transform_1(%arg0: i32) -> (i32, i32, i32) {
    %c0_i32 = arith.constant 0 : i32
    %c0_i32_0 = arith.constant 0 : i32
    %c0_i32_1 = arith.constant 0 : i32
    return %c0_i32, %c0_i32_0, %arg0 : i32, i32, i32
  }
  func.func @transform_2(%arg0: i32) -> (i32, i32, i32) {
    %c0_i32 = arith.constant 0 : i32
    %c0_i32_0 = arith.constant 0 : i32
    %c0_i32_1 = arith.constant 0 : i32
    return %arg0, %c0_i32, %c0_i32_0 : i32, i32, i32
  }
}

</mosaic_0001>

<llo_original>
// kernel: skipgram_forward.1
$region0: #{skipgram_forward.1}
  #allocation0 [shape = 'u32[]', space=smem, size = 0x4, offset = 0x4, fixed_abs, tag = 'smem constant byte address 0x4 - core index']
  #allocation1 [shape = 'u32[144,128]{1,0:T(1,128)}', space=vmem, size = 0x12000, scoped, tag = 'internal scratch']
  %s0 = inlined_call_operand.vmem [shape: bf16[32,128], index: 0, kind: input, shape index: {}]
  %s1 = inlined_call_operand.vmem [shape: bf16[5,32,128], index: 1, kind: input, shape index: {}]
  %s2 = inlined_call_operand.vmem [shape: f32[1,1,128], index: 2, kind: output, shape index: {}]
  %s3 = sld [smem:[#allocation0]]
  $region18: #{skipgram_forward.1} parent=0
    _
  %s5 = ssub.s32 1, %s3
  %s6 = scalar_select 0, %s5, %s3
  // Predicated region
  $region2: #{skipgram_forward.1} parent=0 // pred_check
    _
  $region3: #{skipgram_forward.1} parent=0 // pred_check_branch
    %8 = sbr.rel (0) target = $region5
  $region4: #{skipgram_forward.1} parent=0 // pred_region
    _
  $region5: #{skipgram_forward.1} parent=0 // pred_fallthru
    _
  // Predicated region
  $region6: #{skipgram_forward.1} parent=0 // pred_check
    _
  $region7: #{skipgram_forward.1} parent=0 // pred_check_branch
    %10 = sbr.rel (0) target = $region9
  $region8: #{skipgram_forward.1} parent=0 // pred_region
    _
  $region9: #{skipgram_forward.1} parent=0 // pred_fallthru
    _
  %v11 = vld [vmem:[%s0] sm:$0xf]
  %v12 = vld [vmem:[%s0 + $0x4] sm:$0xf]
  %v13 = vld [vmem:[%s0 + $0x8] sm:$0xf]
  %v14 = vld [vmem:[%s0 + $0xc] sm:$0xf]
  %v15 = vld [vmem:[%s1] sm:$0xf]
  %v16 = vld [vmem:[%s1 + $0x4] sm:$0xf]
  %v17 = vld [vmem:[%s1 + $0x8] sm:$0xf]
  %v18 = vld [vmem:[%s1 + $0xc] sm:$0xf]
  %v19 = vmul.bf16 %v15, %v11
  %v20 = vmul.bf16 %v16, %v12
  %v21 = vmul.bf16 %v17, %v13
  %v22 = vmul.bf16 %v18, %v14
  %v23 = vunpack.c.l.bf16 %v19
  %v24 = vunpack.c.l.bf16 %v20
  %v25 = vunpack.c.l.bf16 %v21
  %v26 = vunpack.c.l.bf16 %v22
  %v27 = vadd.f32 %v23, %v24
  %v28 = vadd.f32 %v27, %v25
  %v29 = vadd.f32 %v28, %v26
  %v30 = vrot.slane %v29, 4
  %v31 = vadd.f32 %v29, %v30
  %v32 = vrot.slane %v31, 2
  %v33 = vadd.f32 %v31, %v32
  %v34 = vrot.slane %v33, 1
  %v35 = vadd.f32 %v33, %v34
  %v36 = vmin.f32 %v35, 0.0
  %v37 = vand.u32 2147483647, %v35
  %v38 = vsub.f32 0.0, %v37
  %v39 = vmul.f32 %v38, 1.442695
  %v40 = vpow.pop %v39
  %v41 = vadd.f32 %v40, 1.0
  %v42 = vlog2.pop %v41
  %v43 = vmul.f32 %v42, 0.6931472
  %v44 = vmul.f32 -0.5, %v40
  %v45 = vadd.f32 %v44, 1.0
  %v46 = vmul.f32 %v45, %v40
  %v47 = vand.u32 2147483647, %v40
  %vm48 = vcmp.lt.f32.partialorder %v47, 0.0004427343
  %v49 = vsel %vm48, %v46, %v43
  %v50 = vsub.f32 %v36, %v49
  %v51 = vadd.f32 %v50, 0.0
  %s52 = scalar_lea.vmem %s1, 16
  %v53 = vld [vmem:[%s52] sm:$0xf]
  %v54 = vld [vmem:[%s52 + $0x4] sm:$0xf]
  %v55 = vld [vmem:[%s52 + $0x8] sm:$0xf]
  %v56 = vld [vmem:[%s52 + $0xc] sm:$0xf]
  %v57 = vmul.bf16 %v53, %v11
  %v58 = vmul.bf16 %v54, %v12
  %v59 = vmul.bf16 %v55, %v13
  %v60 = vmul.bf16 %v56, %v14
  %v61 = vunpack.c.l.bf16 %v57
  %v62 = vunpack.c.l.bf16 %v58
  %v63 = vunpack.c.l.bf16 %v59
  %v64 = vunpack.c.l.bf16 %v60
  %v65 = vadd.f32 %v61, %v62
  %v66 = vadd.f32 %v65, %v63
  %v67 = vadd.f32 %v66, %v64
  %v68 = vrot.slane %v67, 4
  %v69 = vadd.f32 %v67, %v68
  %v70 = vrot.slane %v69, 2
  %v71 = vadd.f32 %v69, %v70
  %v72 = vrot.slane %v71, 1
  %v73 = vadd.f32 %v71, %v72
  %v74 = vsub.f32 0.0, %v73
  %v75 = vmin.f32 %v74, 0.0
  %v76 = vand.u32 2147483647, %v74
  %v77 = vsub.f32 0.0, %v76
  %v78 = vmul.f32 %v77, 1.442695
  %v79 = vpow.pop %v78
  %v80 = vadd.f32 %v79, 1.0
  %v81 = vlog2.pop %v80
  %v82 = vmul.f32 %v81, 0.6931472
  %v83 = vmul.f32 -0.5, %v79
  %v84 = vadd.f32 %v83, 1.0
  %v85 = vmul.f32 %v84, %v79
  %v86 = vand.u32 2147483647, %v79
  %vm87 = vcmp.lt.f32.partialorder %v86, 0.0004427343
  %v88 = vsel %vm87, %v85, %v82
  %v89 = vsub.f32 %v75, %v88
  %v90 = vadd.f32 %v51, %v89
  %s91 = scalar_lea.vmem %s1, 32
  %v92 = vld [vmem:[%s91] sm:$0xf]
  %v93 = vld [vmem:[%s91 + $0x4] sm:$0xf]
  %v94 = vld [vmem:[%s91 + $0x8] sm:$0xf]
  %v95 = vld [vmem:[%s91 + $0xc] sm:$0xf]
  %v96 = vmul.bf16 %v92, %v11
  %v97 = vmul.bf16 %v93, %v12
  %v98 = vmul.bf16 %v94, %v13
  %v99 = vmul.bf16 %v95, %v14
  %v100 = vunpack.c.l.bf16 %v96
  %v101 = vunpack.c.l.bf16 %v97
  %v102 = vunpack.c.l.bf16 %v98
  %v103 = vunpack.c.l.bf16 %v99
  %v104 = vadd.f32 %v100, %v101
  %v105 = vadd.f32 %v104, %v102
  %v106 = vadd.f32 %v105, %v103
  %v107 = vrot.slane %v106, 4
  %v108 = vadd.f32 %v106, %v107
  %v109 = vrot.slane %v108, 2
  %v110 = vadd.f32 %v108, %v109
  %v111 = vrot.slane %v110, 1
  %v112 = vadd.f32 %v110, %v111
  %v113 = vsub.f32 0.0, %v112
  %v114 = vmin.f32 %v113, 0.0
  %v115 = vand.u32 2147483647, %v113
  %v116 = vsub.f32 0.0, %v115
  %v117 = vmul.f32 %v116, 1.442695
  %v118 = vpow.pop %v117
  %v119 = vadd.f32 %v118, 1.0
  %v120 = vlog2.pop %v119
  %v121 = vmul.f32 %v120, 0.6931472
  %v122 = vmul.f32 -0.5, %v118
  %v123 = vadd.f32 %v122, 1.0
  %v124 = vmul.f32 %v123, %v118
  %v125 = vand.u32 2147483647, %v118
  %vm126 = vcmp.lt.f32.partialorder %v125, 0.0004427343
  %v127 = vsel %vm126, %v124, %v121
  %v128 = vsub.f32 %v114, %v127
  %v129 = vadd.f32 %v90, %v128
  %s130 = scalar_lea.vmem %s1, 48
  %v131 = vld [vmem:[%s130] sm:$0xf]
  %v132 = vld [vmem:[%s130 + $0x4] sm:$0xf]
  %v133 = vld [vmem:[%s130 + $0x8] sm:$0xf]
  %v134 = vld [vmem:[%s130 + $0xc] sm:$0xf]
  %v135 = vmul.bf16 %v131, %v11
  %v136 = vmul.bf16 %v132, %v12
  %v137 = vmul.bf16 %v133, %v13
  %v138 = vmul.bf16 %v134, %v14
  %v139 = vunpack.c.l.bf16 %v135
  %v140 = vunpack.c.l.bf16 %v136
  %v141 = vunpack.c.l.bf16 %v137
  %v142 = vunpack.c.l.bf16 %v138
  %v143 = vadd.f32 %v139, %v140
  %v144 = vadd.f32 %v143, %v141
  %v145 = vadd.f32 %v144, %v142
  %v146 = vrot.slane %v145, 4
  %v147 = vadd.f32 %v145, %v146
  %v148 = vrot.slane %v147, 2
  %v149 = vadd.f32 %v147, %v148
  %v150 = vrot.slane %v149, 1
  %v151 = vadd.f32 %v149, %v150
  %v152 = vsub.f32 0.0, %v151
  %v153 = vmin.f32 %v152, 0.0
  %v154 = vand.u32 2147483647, %v152
  %v155 = vsub.f32 0.0, %v154
  %v156 = vmul.f32 %v155, 1.442695
  %v157 = vpow.pop %v156
  %v158 = vadd.f32 %v157, 1.0
  %v159 = vlog2.pop %v158
  %v160 = vmul.f32 %v159, 0.6931472
  %v161 = vmul.f32 -0.5, %v157
  %v162 = vadd.f32 %v161, 1.0
  %v163 = vmul.f32 %v162, %v157
  %v164 = vand.u32 2147483647, %v157
  %vm165 = vcmp.lt.f32.partialorder %v164, 0.0004427343
  %v166 = vsel %vm165, %v163, %v160
  %v167 = vsub.f32 %v153, %v166
  %v168 = vadd.f32 %v129, %v167
  %s169 = scalar_lea.vmem %s1, 64
  %v170 = vld [vmem:[%s169] sm:$0xf]
  %v171 = vld [vmem:[%s169 + $0x4] sm:$0xf]
  %v172 = vld [vmem:[%s169 + $0x8] sm:$0xf]
  %v173 = vld [vmem:[%s169 + $0xc] sm:$0xf]
  %v174 = vmul.bf16 %v170, %v11
  %v175 = vmul.bf16 %v171, %v12
  %v176 = vmul.bf16 %v172, %v13
  %v177 = vmul.bf16 %v173, %v14
  %v178 = vunpack.c.l.bf16 %v174
  %v179 = vunpack.c.l.bf16 %v175
  %v180 = vunpack.c.l.bf16 %v176
  %v181 = vunpack.c.l.bf16 %v177
  %v182 = vadd.f32 %v178, %v179
  %v183 = vadd.f32 %v182, %v180
  %v184 = vadd.f32 %v183, %v181
  %v185 = vrot.slane %v184, 4
  %v186 = vadd.f32 %v184, %v185
  %v187 = vrot.slane %v186, 2
  %v188 = vadd.f32 %v186, %v187
  %v189 = vrot.slane %v188, 1
  %v190 = vadd.f32 %v188, %v189
  %v191 = vsub.f32 0.0, %v190
  %v192 = vmin.f32 %v191, 0.0
  %v193 = vand.u32 2147483647, %v191
  %v194 = vsub.f32 0.0, %v193
  %v195 = vmul.f32 %v194, 1.442695
  %v196 = vpow.pop %v195
  %v197 = vadd.f32 %v196, 1.0
  %v198 = vlog2.pop %v197
  %v199 = vmul.f32 %v198, 0.6931472
  %v200 = vmul.f32 -0.5, %v196
  %v201 = vadd.f32 %v200, 1.0
  %v202 = vmul.f32 %v201, %v196
  %v203 = vand.u32 2147483647, %v196
  %vm204 = vcmp.lt.f32.partialorder %v203, 0.0004427343
  %v205 = vsel %vm204, %v202, %v199
  %v206 = vsub.f32 %v192, %v205
  %v207 = vadd.f32 %v168, %v206
  %s208 = smul.u32 0, 128
  %v209 = vlaneseq
  %v210 = vand.u32 %v209, 127
  %v211 = vstv %s208
  %v212 = vadd.s32 %v211, %v210
  %vm213 = vcmp.lt.s32.totalorder %v212, 8
  %v214 = vsel %vm213, %v207, 0.0
  %215 = vst [vmem:[%s2] sm:$0x1] %v214
  // Predicated region
  $region10: #{skipgram_forward.1} parent=0 // pred_check
    _
  $region11: #{skipgram_forward.1} parent=0 // pred_check_branch
    %217 = sbr.rel (0) target = $region13
  $region12: #{skipgram_forward.1} parent=0 // pred_region
    _
  $region13: #{skipgram_forward.1} parent=0 // pred_fallthru
    _
  // Predicated region
  $region14: #{skipgram_forward.1} parent=0 // pred_check
    _
  $region15: #{skipgram_forward.1} parent=0 // pred_check_branch
    %219 = sbr.rel (0) target = $region17
  $region16: #{skipgram_forward.1} parent=0 // pred_region
    _
  $region17: #{skipgram_forward.1} parent=0 // pred_fallthru
    _

</llo_original>
